<compile_context>
chip_gen: v7x
topology: tpu7x:2x2x1
jax: 0.10.0
libtpu: 0.0.40
codegen_flags: <defaults>
</compile_context>

<pallas_src>
import functools

import jax
import jax.numpy as jnp
from jax.experimental import pallas as pl
from jax.experimental.pallas import tpu as pltpu


def _round_up(n, m):
    return ((n + m - 1) // m) * m


def _make_fm_kernel(F, E, reduce_sum):
    def kernel(x_ref, o_ref):
        # x_ref: (tb, F*E) block in VMEM, flattened field/embedding layout.
        tb = x_ref.shape[0]
        s = jnp.zeros((tb, E), jnp.float32)    # sum over fields
        sq = jnp.zeros((tb, E), jnp.float32)   # sum of squares over fields
        # F is small & static -> unrolled loop of static lane slices (VPU adds).
        for f in range(F):
            xf = x_ref[:, f * E:(f + 1) * E].astype(jnp.float32)
            s = s + xf
            sq = sq + xf * xf
        ix = s * s - sq                        # (tb, E)
        if reduce_sum:
            o_ref[...] = (0.5 * jnp.sum(ix, axis=1, keepdims=True)).astype(o_ref.dtype)
        else:
            o_ref[...] = (0.5 * ix).astype(o_ref.dtype)
    return kernel


@functools.partial(jax.jit, static_argnames=("reduce_sum", "tb"))
def factorization_machine(x, reduce_sum=True, tb=4096):
    """FM second-order interaction.

    x: (B, F, E). Returns (B, 1) if reduce_sum else (B, E).
    """
    B, F, E = x.shape
    FE = F * E

    # Effective batch tile: multiple of 8 sublanes, no bigger than (padded) B.
    tb_eff = min(tb, _round_up(B, 8))
    tb_eff = _round_up(tb_eff, 8)
    B_pad = _round_up(B, tb_eff)

    # Flatten to a 2D lane-dense slab; zero-pad the batch (zero rows give a
    # zero FM interaction, sliced off below).
    x2 = x.reshape(B, FE)
    if B_pad != B:
        x2 = jnp.pad(x2, ((0, B_pad - B), (0, 0)))

    grid = (B_pad // tb_eff,)
    in_spec = pl.BlockSpec((tb_eff, FE), lambda i: (i, 0))

    if reduce_sum:
        out_shape = jax.ShapeDtypeStruct((B_pad, 1), x.dtype)
        out_spec = pl.BlockSpec((tb_eff, 1), lambda i: (i, 0))
    else:
        out_shape = jax.ShapeDtypeStruct((B_pad, E), x.dtype)
        out_spec = pl.BlockSpec((tb_eff, E), lambda i: (i, 0))

    # Explicit VMEM budget: double-buffered in+out blocks (lane-padded) + headroom.
    itemsize = jnp.dtype(x.dtype).itemsize
    in_block = tb_eff * _round_up(FE, 128) * itemsize
    out_lanes = 128 if reduce_sum else _round_up(E, 128)
    out_block = tb_eff * out_lanes * itemsize
    vmem_limit = 2 * (in_block + out_block) + (8 << 20)
    vmem_limit = int(min(max(vmem_limit, 16 << 20), 48 << 20))

    kernel = _make_fm_kernel(F, E, reduce_sum)

    out = pl.pallas_call(
        kernel,
        out_shape=out_shape,
        grid_spec=pltpu.PrefetchScalarGridSpec(
            num_scalar_prefetch=0,
            grid=grid,
            in_specs=[in_spec],
            out_specs=out_spec,
        ),
        compiler_params=pltpu.CompilerParams(
            dimension_semantics=("parallel",),
            vmem_limit_bytes=vmem_limit,
        ),
    )(x2)

    if B_pad != B:
        out = out[:B]
    return out


def _fm_reference(x, reduce_sum=True):
    square_of_sum = jnp.sum(x, axis=1) ** 2
    sum_of_square = jnp.sum(x ** 2, axis=1)
    ix = square_of_sum - sum_of_square
    if reduce_sum:
        ix = jnp.sum(ix, axis=1, keepdims=True)
    return 0.5 * ix


if __name__ == "__main__":
    # FactorizationMachine has no learned parameters (__init__ only stores a flag).
    key = jax.random.PRNGKey(0)
    B, F, E = 8, 10, 16   # small (B, F, E) consistent with the forward
    x = jax.random.normal(key, (B, F, E), dtype=jnp.float32)

    out = jax.block_until_ready(factorization_machine(x, reduce_sum=True))
    ref = _fm_reference(x, reduce_sum=True)
    assert out.shape == (B, 1)
    assert jnp.allclose(out, ref, atol=1e-4, rtol=1e-4), "mismatch vs reference"

    # reduce_sum=False branch
    out2 = jax.block_until_ready(factorization_machine(x, reduce_sum=False))
    ref2 = _fm_reference(x, reduce_sum=False)
    assert out2.shape == (B, E)
    assert jnp.allclose(out2, ref2, atol=1e-4, rtol=1e-4), "mismatch vs reference (no reduce)"

    # batch size not a multiple of the tile / sublane count (exercises padding path)
    x3 = jax.random.normal(jax.random.PRNGKey(1), (6, F, E), dtype=jnp.float32)
    out3 = jax.block_until_ready(factorization_machine(x3, reduce_sum=True))
    ref3 = _fm_reference(x3, reduce_sum=True)
    assert out3.shape == (6, 1)
    assert jnp.allclose(out3, ref3, atol=1e-4, rtol=1e-4), "mismatch vs reference (padded batch)"

    print("KERNEL_OK")
</pallas_src>

<mosaic_0001>
module attributes {stable_mosaic.version = 11 : i64} {
  func.func @kernel(%arg0: i32, %arg1: memref<8x160xf32, #tpu.memory_space<vmem>>, %arg2: memref<8x1xf32, #tpu.memory_space<vmem>>) attributes {dimension_semantics = [#tpu.dimension_semantics<parallel>], iteration_bounds = array<i64: 1>, scalar_prefetch = 0 : i64, scratch_operands = 0 : i64, tpu.core_type = #tpu.core_type<tc>, window_params = [{transform_indices = @transform_0, window_bounds = array<i64: 8, 160>}, {transform_indices = @transform_1, window_bounds = array<i64: 8, 1>}]} {
    %cst = arith.constant 0.000000e+00 : f32
    %0 = vector.broadcast %cst : f32 to vector<8x16xf32>
    %cst_0 = arith.constant 0.000000e+00 : f32
    %1 = vector.broadcast %cst_0 : f32 to vector<8x16xf32>
    %c0 = arith.constant 0 : index
    %c0_1 = arith.constant 0 : index
    %2 = vector.load %arg1[%c0, %c0_1] : memref<8x160xf32, #tpu.memory_space<vmem>>, vector<8x16xf32>
    %3 = arith.addf %0, %2 : vector<8x16xf32>
    %4 = arith.mulf %2, %2 : vector<8x16xf32>
    %5 = arith.addf %1, %4 : vector<8x16xf32>
    %c0_2 = arith.constant 0 : index
    %c16 = arith.constant 16 : index
    %6 = vector.load %arg1[%c0_2, %c16] : memref<8x160xf32, #tpu.memory_space<vmem>>, vector<8x16xf32>
    %7 = arith.addf %3, %6 : vector<8x16xf32>
    %8 = arith.mulf %6, %6 : vector<8x16xf32>
    %9 = arith.addf %5, %8 : vector<8x16xf32>
    %c0_3 = arith.constant 0 : index
    %c32 = arith.constant 32 : index
    %10 = vector.load %arg1[%c0_3, %c32] : memref<8x160xf32, #tpu.memory_space<vmem>>, vector<8x16xf32>
    %11 = arith.addf %7, %10 : vector<8x16xf32>
    %12 = arith.mulf %10, %10 : vector<8x16xf32>
    %13 = arith.addf %9, %12 : vector<8x16xf32>
    %c0_4 = arith.constant 0 : index
    %c48 = arith.constant 48 : index
    %14 = vector.load %arg1[%c0_4, %c48] : memref<8x160xf32, #tpu.memory_space<vmem>>, vector<8x16xf32>
    %15 = arith.addf %11, %14 : vector<8x16xf32>
    %16 = arith.mulf %14, %14 : vector<8x16xf32>
    %17 = arith.addf %13, %16 : vector<8x16xf32>
    %c0_5 = arith.constant 0 : index
    %c64 = arith.constant 64 : index
    %18 = vector.load %arg1[%c0_5, %c64] : memref<8x160xf32, #tpu.memory_space<vmem>>, vector<8x16xf32>
    %19 = arith.addf %15, %18 : vector<8x16xf32>
    %20 = arith.mulf %18, %18 : vector<8x16xf32>
    %21 = arith.addf %17, %20 : vector<8x16xf32>
    %c0_6 = arith.constant 0 : index
    %c80 = arith.constant 80 : index
    %22 = vector.load %arg1[%c0_6, %c80] : memref<8x160xf32, #tpu.memory_space<vmem>>, vector<8x16xf32>
    %23 = arith.addf %19, %22 : vector<8x16xf32>
    %24 = arith.mulf %22, %22 : vector<8x16xf32>
    %25 = arith.addf %21, %24 : vector<8x16xf32>
    %c0_7 = arith.constant 0 : index
    %c96 = arith.constant 96 : index
    %26 = vector.load %arg1[%c0_7, %c96] : memref<8x160xf32, #tpu.memory_space<vmem>>, vector<8x16xf32>
    %27 = arith.addf %23, %26 : vector<8x16xf32>
    %28 = arith.mulf %26, %26 : vector<8x16xf32>
    %29 = arith.addf %25, %28 : vector<8x16xf32>
    %c0_8 = arith.constant 0 : index
    %c112 = arith.constant 112 : index
    %30 = vector.load %arg1[%c0_8, %c112] : memref<8x160xf32, #tpu.memory_space<vmem>>, vector<8x16xf32>
    %31 = arith.addf %27, %30 : vector<8x16xf32>
    %32 = arith.mulf %30, %30 : vector<8x16xf32>
    %33 = arith.addf %29, %32 : vector<8x16xf32>
    %c0_9 = arith.constant 0 : index
    %c128 = arith.constant 128 : index
    %34 = vector.load %arg1[%c0_9, %c128] : memref<8x160xf32, #tpu.memory_space<vmem>>, vector<8x16xf32>
    %35 = arith.addf %31, %34 : vector<8x16xf32>
    %36 = arith.mulf %34, %34 : vector<8x16xf32>
    %37 = arith.addf %33, %36 : vector<8x16xf32>
    %c0_10 = arith.constant 0 : index
    %c144 = arith.constant 144 : index
    %38 = vector.load %arg1[%c0_10, %c144] : memref<8x160xf32, #tpu.memory_space<vmem>>, vector<8x16xf32>
    %39 = arith.addf %35, %38 : vector<8x16xf32>
    %40 = arith.mulf %38, %38 : vector<8x16xf32>
    %41 = arith.addf %37, %40 : vector<8x16xf32>
    %42 = arith.mulf %39, %39 : vector<8x16xf32>
    %43 = arith.subf %42, %41 : vector<8x16xf32>
    %cst_11 = arith.constant dense<0.000000e+00> : vector<8xf32>
    %44 = vector.multi_reduction <add>, %43, %cst_11 [1] : vector<8x16xf32> to vector<8xf32>
    %45 = vector.shape_cast %44 : vector<8xf32> to vector<8x1xf32>
    %cst_12 = arith.constant 5.000000e-01 : f32
    %46 = vector.broadcast %cst_12 : f32 to vector<8x1xf32>
    %47 = arith.mulf %46, %45 : vector<8x1xf32>
    %c0_13 = arith.constant 0 : index
    %c0_14 = arith.constant 0 : index
    %48 = vector.load %arg2[%c0_13, %c0_14] : memref<8x1xf32, #tpu.memory_space<vmem>>, vector<8x1xf32>
    tpu.vector_store %arg2[%c0_13, %c0_14], %47 {strides = array<i32>} : memref<8x1xf32, #tpu.memory_space<vmem>>, vector<8x1xf32>,
    return
  }
  func.func @transform_0(%arg0: i32) -> (i32, i32) {
    %c0_i32 = arith.constant 0 : i32
    %c0_i32_0 = arith.constant 0 : i32
    return %arg0, %c0_i32 : i32, i32
  }
  func.func @transform_1(%arg0: i32) -> (i32, i32) {
    %c0_i32 = arith.constant 0 : i32
    %c0_i32_0 = arith.constant 0 : i32
    return %arg0, %c0_i32 : i32, i32
  }
}

</mosaic_0001>

<llo_original>
// kernel: factorization_machine.1
$region0: #{factorization_machine.1}
  #allocation0 [shape = 'u32[]', space=smem, size = 0x4, offset = 0x4, fixed_abs, tag = 'smem constant byte address 0x4 - core index']
  #allocation1 [shape = 'u32[144,128]{1,0:T(1,128)}', space=vmem, size = 0x12000, scoped, tag = 'internal scratch']
  %s0 = inlined_call_operand.vmem [shape: f32[8,160], index: 0, kind: input, shape index: {}]
  %s1 = inlined_call_operand.vmem [shape: f32[8,1], index: 1, kind: output, shape index: {}]
  %s2 = sld [smem:[#allocation0]]
  $region14: #{factorization_machine.1} parent=0
    _
  %s4 = ssub.s32 1, %s2
  %s5 = scalar_select 0, %s4, %s2
  // Predicated region
  $region2: #{factorization_machine.1} parent=0 // pred_check
    _
  $region3: #{factorization_machine.1} parent=0 // pred_check_branch
    %7 = sbr.rel (0) target = $region5
  $region4: #{factorization_machine.1} parent=0 // pred_region
    _
  $region5: #{factorization_machine.1} parent=0 // pred_fallthru
    _
  %v8 = vld [vmem:[%s0] sm:$0xff]
  %v9 = vadd.f32 %v8, 0.0
  %v10 = vmul.f32 %v8, %v8
  %v11 = vadd.f32 %v10, 0.0
  %13 = vrot.lane.b32.xlu0 %v8, 112
  %v14 = vpop.permute.xlu0 %13
  %v16 = vadd.f32 %v9, %v14
  %18 = vrot.lane.b32.xlu0 %v10, 112
  %v19 = vpop.permute.xlu0 %18
  %v21 = vadd.f32 %v11, %v19
  %22 = vrot.lane.b32.xlu0 %v8, 96
  %v23 = vpop.permute.xlu0 %22
  %v25 = vadd.f32 %v16, %v23
  %26 = vrot.lane.b32.xlu0 %v10, 96
  %v27 = vpop.permute.xlu0 %26
  %v29 = vadd.f32 %v21, %v27
  %30 = vrot.lane.b32.xlu0 %v8, 80
  %v31 = vpop.permute.xlu0 %30
  %v33 = vadd.f32 %v25, %v31
  %34 = vrot.lane.b32.xlu0 %v10, 80
  %v35 = vpop.permute.xlu0 %34
  %v37 = vadd.f32 %v29, %v35
  %38 = vrot.lane.b32.xlu0 %v8, 64
  %v39 = vpop.permute.xlu0 %38
  %v41 = vadd.f32 %v33, %v39
  %42 = vrot.lane.b32.xlu0 %v10, 64
  %v43 = vpop.permute.xlu0 %42
  %v45 = vadd.f32 %v37, %v43
  %46 = vrot.lane.b32.xlu0 %v8, 48
  %v47 = vpop.permute.xlu0 %46
  %v49 = vadd.f32 %v41, %v47
  %50 = vrot.lane.b32.xlu0 %v10, 48
  %v51 = vpop.permute.xlu0 %50
  %v53 = vadd.f32 %v45, %v51
  %54 = vrot.lane.b32.xlu0 %v8, 32
  %v55 = vpop.permute.xlu0 %54
  %v57 = vadd.f32 %v49, %v55
  %58 = vrot.lane.b32.xlu0 %v10, 32
  %v59 = vpop.permute.xlu0 %58
  %v61 = vadd.f32 %v53, %v59
  %62 = vrot.lane.b32.xlu0 %v8, 16
  %v63 = vpop.permute.xlu0 %62
  %v65 = vadd.f32 %v57, %v63
  %66 = vrot.lane.b32.xlu0 %v10, 16
  %v67 = vpop.permute.xlu0 %66
  %v69 = vadd.f32 %v61, %v67
  %v70 = vld [vmem:[%s0 + $0x8] sm:$0xff]
  %v71 = vadd.f32 %v65, %v70
  %v72 = vmul.f32 %v70, %v70
  %v73 = vadd.f32 %v69, %v72
  %75 = vrot.lane.b32.xlu0 %v70, 112
  %v76 = vpop.permute.xlu0 %75
  %v78 = vadd.f32 %v71, %v76
  %80 = vrot.lane.b32.xlu0 %v72, 112
  %v81 = vpop.permute.xlu0 %80
  %v83 = vadd.f32 %v73, %v81
  %v84 = vmul.f32 %v78, %v78
  %v85 = vsub.f32 %v84, %v83
  %vm86 = vcmask 130048
  %v87 = vsel %vm86, %v85, 0.0
  %88 = vadd.xlane.f32.xlu0 %v87
  %v89 = vpop.xlane.xlu0 %88
  %v90 = vmul.f32 %v89, 0.5
  %vm91 = vcmask 7168
  %92 = vst.msk [vmem:[%s1] sm:$0xff] %vm91, %v90
  // Predicated region
  $region6: #{factorization_machine.1} parent=0 // pred_check
    _
  $region7: #{factorization_machine.1} parent=0 // pred_check_branch
    %94 = sbr.rel (0) target = $region9
  $region8: #{factorization_machine.1} parent=0 // pred_region
    _
  $region9: #{factorization_machine.1} parent=0 // pred_fallthru
    _
  // Predicated region
  $region10: #{factorization_machine.1} parent=0 // pred_check
    _
  $region11: #{factorization_machine.1} parent=0 // pred_check_branch
    %96 = sbr.rel (0) target = $region13
  $region12: #{factorization_machine.1} parent=0 // pred_region
    _
  $region13: #{factorization_machine.1} parent=0 // pred_fallthru
    _

</llo_original>
